<compile_context>
chip_gen: v7x
topology: tpu7x:2x2x1
jax: 0.10.0
libtpu: 0.0.40
codegen_flags: <defaults>
</compile_context>

<pallas_src>
import math

import jax
import jax.numpy as jnp
from jax.experimental import pallas as pl
from jax.experimental.pallas import tpu as pltpu


# ----------------------------------------------------------------------------
# Kernels
# ----------------------------------------------------------------------------

def _ffn_streamed_kernel(x_ref, w1_ref, b1_ref, w2_ref, b2_ref, o_ref, acc_ref):
    """Grid = (row tiles, d_ff chunks); the d_ff (k) axis is the reduction."""
    k = pl.program_id(1)

    @pl.when(k == 0)
    def _init():
        acc_ref[...] = jnp.zeros_like(acc_ref)

    # First matmul chunk on the MXU, f32 accumulate.
    h = jnp.dot(x_ref[...], w1_ref[...], preferred_element_type=jnp.float32)
    # Bias + ReLU in f32 (v5e VPU has no bf16 path).
    h = jnp.maximum(h + b1_ref[...], 0.0)
    # dropout == identity (eval mode)

    # Second matmul chunk, accumulate into the resident f32 scratch.
    acc_ref[...] += jnp.dot(h.astype(w2_ref.dtype), w2_ref[...],
                            preferred_element_type=jnp.float32)

    @pl.when(k == pl.num_programs(1) - 1)
    def _finalize():
        o_ref[...] = (acc_ref[...] + b2_ref[...]).astype(o_ref.dtype)


def _ffn_resident_kernel(x_ref, w1_ref, b1_ref, w2_ref, b2_ref, o_ref):
    """Grid = (row tiles,); both weight matrices are VMEM-resident."""
    h = jnp.dot(x_ref[...], w1_ref[...], preferred_element_type=jnp.float32)
    h = jnp.maximum(h + b1_ref[...], 0.0)
    # dropout == identity (eval mode)
    y = jnp.dot(h.astype(w2_ref.dtype), w2_ref[...],
                preferred_element_type=jnp.float32)
    o_ref[...] = (y + b2_ref[...]).astype(o_ref.dtype)


# ----------------------------------------------------------------------------
# Tile / budget selection
# ----------------------------------------------------------------------------

def _round_up(x, m):
    return ((x + m - 1) // m) * m


def _vmem_budget_bytes():
    """~75% of physical VMEM: ~96 MiB on v5e/v6e (128 MiB), ~48 MiB on v7x (64 MiB)."""
    phys = None
    try:
        phys = getattr(pltpu.get_tpu_info(), "vmem_capacity_bytes", None)
    except Exception:
        phys = None
    if not phys:
        phys = 64 * 1024 * 1024  # conservative (v7x-sized) fallback
    return int(phys) * 3 // 4


def _est_streamed(tm, tkff, d_model, csz, osz):
    # Double-buffered pipelined tiles + persistent f32 accumulator + in-kernel
    # temporaries (f32 h chunk + its bf16 cast).
    return (2 * (tm * d_model * csz          # x tile
                 + d_model * tkff * csz      # w1 chunk
                 + tkff * 4                  # b1 chunk
                 + tkff * d_model * csz      # w2 chunk
                 + d_model * 4               # b2
                 + tm * d_model * osz)       # out tile
            + tm * d_model * 4               # f32 accumulator scratch
            + tm * tkff * (4 + csz))         # h chunk (f32 + cast)


def _est_resident(tm, d_model, d_ff, csz, osz):
    return (2 * (d_model * d_ff * csz + d_ff * 4       # w1, b1
                 + d_ff * d_model * csz + d_model * 4  # w2, b2
                 + tm * d_model * csz                  # x tile
                 + tm * d_model * osz)                 # out tile
            + tm * d_ff * (4 + csz)                    # h (f32 + cast)
            + tm * d_model * 4)                        # 2nd matmul f32 result


def _choose_config(M, d_model, d_ff, csz, osz, budget, tm_req, tkff_req,
                   resident_req):
    m_pad16 = _round_up(M, 16)

    # Row-tile candidates, descending.  tm is the primary knob: in the
    # streamed path weight chunks are re-fetched once per row tile.
    if tm_req is not None:
        tm_cands = [max(16, min(_round_up(tm_req, 16), m_pad16))]
    else:
        cap = 1024
        # Keep >= 2 row tiles when the problem allows it, so the "parallel"
        # row axis can be sharded across both v7x TensorCores.
        if m_pad16 >= 32:
            cap = min(cap, max(16, (m_pad16 // 2) // 16 * 16))
        else:
            cap = min(cap, m_pad16)
        tm_cands = [t for t in (1024, 768, 512, 384, 256, 192, 128, 96,
                                64, 48, 32, 16) if t <= cap]
        if not tm_cands:
            tm_cands = [16]

    # d_ff chunk candidates: multiples of 256 keep the 256-wide MXU on
    # v6e/v7x full; 128 only as a fallback (fine for v5e's 128x128 MXU).
    if tkff_req is not None:
        tkff_cands = [tkff_req]
    else:
        tkff_cands = [t for t in (512, 256, 128) if d_ff % t == 0]
        if not tkff_cands:
            tkff_cands = [d_ff]

    # Weights-resident fast path.
    if resident_req is not False:
        for tm in tm_cands:
            est = _est_resident(tm, d_model, d_ff, csz, osz)
            if est <= budget:
                return dict(resident=True, tm=tm, tkff=d_ff, est=est)
        if resident_req is True:
            tm = tm_cands[-1]
            return dict(resident=True, tm=tm, tkff=d_ff,
                        est=_est_resident(tm, d_model, d_ff, csz, osz))

    # Streamed path: prefer the largest tm that fits, then the largest tkff.
    for tm in tm_cands:
        for tkff in tkff_cands:
            est = _est_streamed(tm, tkff, d_model, csz, osz)
            if est <= budget:
                return dict(resident=False, tm=tm, tkff=tkff, est=est)
    tm, tkff = tm_cands[-1], tkff_cands[-1]
    return dict(resident=False, tm=tm, tkff=tkff,
                est=_est_streamed(tm, tkff, d_model, csz, osz))


# ----------------------------------------------------------------------------
# Wrapper
# ----------------------------------------------------------------------------

def position_wise_feed_forward(x, w1, b1, w2, b2, *, tm=None, tkff=None,
                               compute_dtype=jnp.bfloat16,
                               weights_resident=None):
    """Eval-mode FFN forward: relu(x @ w1 + b1) @ w2 + b2 (dropout == identity).

    x : (B, S, d_model); w1: (d_model, d_ff); b1: (d_ff,);
    w2: (d_ff, d_model); b2: (d_model,).  Returns (B, S, d_model) in x.dtype.

    tm (row tile) is the primary knob for HBM weight traffic in the streamed
    path; leave tm/tkff as None to auto-size against the per-generation VMEM
    budget.  Pass w1/w2 already in `compute_dtype` (e.g. store params in bf16)
    to avoid a per-call HBM convert of the full weight matrices.
    """
    B, S, d_model = x.shape
    d_ff = w1.shape[1]
    assert w1.shape == (d_model, d_ff)
    assert w2.shape == (d_ff, d_model)
    M = B * S
    out_dtype = x.dtype

    csz = jnp.dtype(compute_dtype).itemsize
    osz = jnp.dtype(out_dtype).itemsize
    budget = _vmem_budget_bytes()

    if tkff is not None:
        assert d_ff % tkff == 0 and (tkff % 128 == 0 or tkff == d_ff)

    cfg = _choose_config(M, d_model, d_ff, csz, osz, budget, tm, tkff,
                         weights_resident)
    tm_, tkff_, resident = cfg["tm"], cfg["tkff"], cfg["resident"]

    m_pad = _round_up(M, tm_)
    grid_m = m_pad // tm_
    grid_k = d_ff // tkff_

    # Host-side casts.  Weight casts are no-ops when params are already stored
    # in compute_dtype; casts never happen per grid step inside the kernel.
    x2 = x.reshape(M, d_model)
    if x2.dtype != compute_dtype:
        x2 = x2.astype(compute_dtype)
    if m_pad != M:
        x2 = jnp.pad(x2, ((0, m_pad - M), (0, 0)))
    w1c = w1 if w1.dtype == compute_dtype else w1.astype(compute_dtype)
    w2c = w2 if w2.dtype == compute_dtype else w2.astype(compute_dtype)
    b1_2 = b1.reshape(1, d_ff).astype(jnp.float32)
    b2_2 = b2.reshape(1, d_model).astype(jnp.float32)

    # Accurate VMEM request (double buffering already counted once in the
    # estimate) plus headroom for compiler-internal scratch.
    vmem_limit = int(min(budget,
                         max(4 * 1024 * 1024,
                             _round_up(int(cfg["est"] * 1.2), 1 << 20))))

    weight_bytes = ((w1c.size + w2c.size) * csz + (b1_2.size + b2_2.size) * 4)
    cost = pl.CostEstimate(
        flops=4 * m_pad * d_model * d_ff,     # two matmuls, 2*m*n*k each
        transcendentals=0,
        bytes_accessed=int(m_pad * d_model * (csz + osz)
                           + (1 if resident else grid_m) * weight_bytes),
    )

    if resident:
        grid_spec = pltpu.PrefetchScalarGridSpec(
            num_scalar_prefetch=0,
            grid=(grid_m,),
            in_specs=[
                pl.BlockSpec((tm_, d_model), lambda i: (i, 0)),     # x tile
                pl.BlockSpec((d_model, d_ff), lambda i: (0, 0)),    # w1 (resident)
                pl.BlockSpec((1, d_ff), lambda i: (0, 0)),          # b1
                pl.BlockSpec((d_ff, d_model), lambda i: (0, 0)),    # w2 (resident)
                pl.BlockSpec((1, d_model), lambda i: (0, 0)),       # b2
            ],
            out_specs=pl.BlockSpec((tm_, d_model), lambda i: (i, 0)),
        )
        kernel = _ffn_resident_kernel
        dim_sem = ("parallel",)
    else:
        grid_spec = pltpu.PrefetchScalarGridSpec(
            num_scalar_prefetch=0,
            grid=(grid_m, grid_k),
            in_specs=[
                pl.BlockSpec((tm_, d_model), lambda i, k: (i, 0)),    # x tile
                pl.BlockSpec((d_model, tkff_), lambda i, k: (0, k)),  # w1 chunk
                pl.BlockSpec((1, tkff_), lambda i, k: (0, k)),        # b1 chunk
                pl.BlockSpec((tkff_, d_model), lambda i, k: (k, 0)),  # w2 chunk
                pl.BlockSpec((1, d_model), lambda i, k: (0, 0)),      # b2
            ],
            out_specs=pl.BlockSpec((tm_, d_model), lambda i, k: (i, 0)),
            scratch_shapes=[pltpu.VMEM((tm_, d_model), jnp.float32)],
        )
        kernel = _ffn_streamed_kernel
        dim_sem = ("parallel", "arbitrary")

    out2 = pl.pallas_call(
        kernel,
        out_shape=jax.ShapeDtypeStruct((m_pad, d_model), out_dtype),
        grid_spec=grid_spec,
        compiler_params=pltpu.CompilerParams(
            dimension_semantics=dim_sem,
            vmem_limit_bytes=vmem_limit,
        ),
        cost_estimate=cost,
    )(x2, w1c, b1_2, w2c, b2_2)

    return out2[:M].reshape(B, S, d_model)


def init_params(key, d_model, d_ff, dtype=jnp.float32):
    """Deterministic PyTorch-Linear-style init (uniform +-1/sqrt(fan_in)),
    weights stored pre-transposed as (in_features, out_features)."""
    k1, k2, k3, k4 = jax.random.split(key, 4)
    bound1 = 1.0 / math.sqrt(d_model)
    bound2 = 1.0 / math.sqrt(d_ff)
    w1 = jax.random.uniform(k1, (d_model, d_ff), dtype, -bound1, bound1)
    b1 = jax.random.uniform(k2, (d_ff,), dtype, -bound1, bound1)
    w2 = jax.random.uniform(k3, (d_ff, d_model), dtype, -bound2, bound2)
    b2 = jax.random.uniform(k4, (d_model,), dtype, -bound2, bound2)
    return w1, b1, w2, b2


if __name__ == "__main__":
    key = jax.random.PRNGKey(0)
    kx, kp = jax.random.split(key)

    # Small but lane-aligned shapes (d_model, d_ff multiples of 128).
    batch, seq, d_model, d_ff = 2, 64, 128, 512
    x = jax.random.normal(kx, (batch, seq, d_model), jnp.float32)
    w1, b1, w2, b2 = init_params(kp, d_model, d_ff)

    # Store the big matrices in the compute dtype once (as a deployment
    # would), so the wrapper's weight casts are no-ops.
    w1_c = w1.astype(jnp.bfloat16)
    w2_c = w2.astype(jnp.bfloat16)

    # Reference in plain f32 JAX (eval-mode dropout == identity).
    ref = jnp.maximum(x.reshape(-1, d_model) @ w1 + b1, 0.0) @ w2 + b2
    ref = ref.reshape(batch, seq, d_model)

    # 1) Auto config: weights fit in VMEM -> resident path, grid=(row tiles,)
    #    with >=2 row tiles so both v7x TensorCores get work.
    out_resident = position_wise_feed_forward(x, w1_c, b1, w2_c, b2)
    out_resident = jax.block_until_ready(out_resident)

    # 2) Forced streamed path (exercises the d_ff reduction axis + f32
    #    accumulator), tkff a 256-multiple for the 256-wide MXU.
    out_streamed = position_wise_feed_forward(
        x, w1_c, b1, w2_c, b2, tkff=256, weights_resident=False)
    out_streamed = jax.block_until_ready(out_streamed)

    for out in (out_resident, out_streamed):
        assert out.shape == (batch, seq, d_model)
        # bf16 matmuls with f32 accumulation -> loose tolerance vs f32 ref.
        assert jnp.allclose(out, ref, atol=5e-2, rtol=5e-2), (
            float(jnp.max(jnp.abs(out - ref))))

    print("KERNEL_OK")
</pallas_src>

<mosaic_0001>
module attributes {stable_mosaic.version = 11 : i64} {
  func.func @_ffn_resident_kernel(%arg0: i32, %arg1: memref<64x128xbf16, #tpu.memory_space<vmem>>, %arg2: memref<128x512xbf16, #tpu.memory_space<vmem>>, %arg3: memref<1x512xf32, #tpu.memory_space<vmem>>, %arg4: memref<512x128xbf16, #tpu.memory_space<vmem>>, %arg5: memref<1x128xf32, #tpu.memory_space<vmem>>, %arg6: memref<64x128xf32, #tpu.memory_space<vmem>>) attributes {dimension_semantics = [#tpu.dimension_semantics<parallel>], iteration_bounds = array<i64: 2>, scalar_prefetch = 0 : i64, scratch_operands = 0 : i64, tpu.core_type = #tpu.core_type<tc>, window_params = [{transform_indices = @transform_0, window_bounds = array<i64: 64, 128>}, {pipeline_mode = #tpu.pipeline_mode<synchronous>, transform_indices = @transform_1, window_bounds = array<i64: 128, 512>}, {pipeline_mode = #tpu.pipeline_mode<synchronous>, transform_indices = @transform_2, window_bounds = array<i64: 1, 512>}, {pipeline_mode = #tpu.pipeline_mode<synchronous>, transform_indices = @transform_3, window_bounds = array<i64: 512, 128>}, {pipeline_mode = #tpu.pipeline_mode<synchronous>, transform_indices = @transform_4, window_bounds = array<i64: 1, 128>}, {transform_indices = @transform_5, window_bounds = array<i64: 64, 128>}]} {
    %c0 = arith.constant 0 : index
    %c0_0 = arith.constant 0 : index
    %0 = vector.load %arg1[%c0, %c0_0] : memref<64x128xbf16, #tpu.memory_space<vmem>>, vector<64x128xbf16>
    %c0_1 = arith.constant 0 : index
    %c0_2 = arith.constant 0 : index
    %1 = vector.load %arg2[%c0_1, %c0_2] : memref<128x512xbf16, #tpu.memory_space<vmem>>, vector<128x512xbf16>
    %cst = arith.constant dense<0.000000e+00> : vector<64x512xf32>
    %2 = tpu.matmul %0, %1, %cst {dimension_numbers = #tpu.dot_dimension_numbers<[1], [0], [0], [1], [0, 0, 1, 1], [], []>} : vector<64x128xbf16>, vector<128x512xbf16>, vector<64x512xf32> -> vector<64x512xf32>
    %c0_3 = arith.constant 0 : index
    %c0_4 = arith.constant 0 : index
    %3 = vector.load %arg3[%c0_3, %c0_4] : memref<1x512xf32, #tpu.memory_space<vmem>>, vector<1x512xf32>
    %4 = vector.broadcast %3 : vector<1x512xf32> to vector<64x512xf32>
    %5 = arith.addf %2, %4 : vector<64x512xf32>
    %cst_5 = arith.constant 0.000000e+00 : f32
    %6 = vector.broadcast %cst_5 : f32 to vector<64x512xf32>
    %7 = arith.maximumf %5, %6 : vector<64x512xf32>
    %8 = arith.truncf %7 : vector<64x512xf32> to vector<64x512xbf16>
    %c0_6 = arith.constant 0 : index
    %c0_7 = arith.constant 0 : index
    %9 = vector.load %arg4[%c0_6, %c0_7] : memref<512x128xbf16, #tpu.memory_space<vmem>>, vector<512x128xbf16>
    %cst_8 = arith.constant dense<0.000000e+00> : vector<64x128xf32>
    %10 = tpu.matmul %8, %9, %cst_8 {dimension_numbers = #tpu.dot_dimension_numbers<[1], [0], [0], [1], [0, 0, 1, 1], [], []>} : vector<64x512xbf16>, vector<512x128xbf16>, vector<64x128xf32> -> vector<64x128xf32>
    %c0_9 = arith.constant 0 : index
    %c0_10 = arith.constant 0 : index
    %11 = vector.load %arg5[%c0_9, %c0_10] : memref<1x128xf32, #tpu.memory_space<vmem>>, vector<1x128xf32>
    %12 = vector.broadcast %11 : vector<1x128xf32> to vector<64x128xf32>
    %13 = arith.addf %10, %12 : vector<64x128xf32>
    %c0_11 = arith.constant 0 : index
    %c0_12 = arith.constant 0 : index
    %14 = vector.load %arg6[%c0_11, %c0_12] : memref<64x128xf32, #tpu.memory_space<vmem>>, vector<64x128xf32>
    tpu.vector_store %arg6[%c0_11, %c0_12], %13 {strides = array<i32>} : memref<64x128xf32, #tpu.memory_space<vmem>>, vector<64x128xf32>,
    return
  }
  func.func @transform_0(%arg0: i32) -> (i32, i32) {
    %c0_i32 = arith.constant 0 : i32
    %c0_i32_0 = arith.constant 0 : i32
    return %arg0, %c0_i32 : i32, i32
  }
  func.func @transform_1(%arg0: i32) -> (i32, i32) {
    %c0_i32 = arith.constant 0 : i32
    %c0_i32_0 = arith.constant 0 : i32
    %c0_i32_1 = arith.constant 0 : i32
    return %c0_i32, %c0_i32_0 : i32, i32
  }
  func.func @transform_2(%arg0: i32) -> (i32, i32) {
    %c0_i32 = arith.constant 0 : i32
    %c0_i32_0 = arith.constant 0 : i32
    %c0_i32_1 = arith.constant 0 : i32
    return %c0_i32, %c0_i32_0 : i32, i32
  }
  func.func @transform_3(%arg0: i32) -> (i32, i32) {
    %c0_i32 = arith.constant 0 : i32
    %c0_i32_0 = arith.constant 0 : i32
    %c0_i32_1 = arith.constant 0 : i32
    return %c0_i32, %c0_i32_0 : i32, i32
  }
  func.func @transform_4(%arg0: i32) -> (i32, i32) {
    %c0_i32 = arith.constant 0 : i32
    %c0_i32_0 = arith.constant 0 : i32
    %c0_i32_1 = arith.constant 0 : i32
    return %c0_i32, %c0_i32_0 : i32, i32
  }
  func.func @transform_5(%arg0: i32) -> (i32, i32) {
    %c0_i32 = arith.constant 0 : i32
    %c0_i32_0 = arith.constant 0 : i32
    return %arg0, %c0_i32 : i32, i32
  }
}

</mosaic_0001>

<llo_original>
// kernel: tpu_custom_call.1
$region0: #{tpu_custom_call.1}
  #allocation0 [shape = 'u32[]', space=smem, size = 0x4, offset = 0x4, fixed_abs, tag = 'smem constant byte address 0x4 - core index']
  #allocation1 [shape = 'u32[144,128]{1,0:T(1,128)}', space=vmem, size = 0x12000, scoped, tag = 'internal scratch']
  %s0 = inlined_call_operand.hbm [shape: bf16[128,128], index: 0, kind: input, shape index: {}]
  %s1 = inlined_call_operand.hbm [shape: bf16[128,512], index: 1, kind: input, shape index: {}]
  %s2 = inlined_call_operand.vmem [shape: f32[1,512], index: 2, kind: input, shape index: {}]
  %s3 = inlined_call_operand.hbm [shape: bf16[512,128], index: 3, kind: input, shape index: {}]
  %s4 = inlined_call_operand.vmem [shape: f32[1,128], index: 4, kind: input, shape index: {}]
  %s5 = inlined_call_operand.hbm [shape: f32[128,128], index: 5, kind: output, shape index: {}]
  %s6 = sld [smem:[#allocation0]]
  $region65: #{tpu_custom_call.1} parent=0
    _
  %s8 = ssub.s32 1, %s6
  %s9 = scalar_select 0, %s8, %s6
  $region1: #{tpu_custom_call.1} parent=0
    #allocation2 [shape = 'u8[32768]{0}', space=vmem, size = 0x8000, scoped, tag = 'input window, operand 0']
    #allocation3 [shape = 's32[2]{0}', space=sflag, size = 0x8, scoped, tag = 'scoped memory for tpu_custom_call.1']
    #allocation4 [shape = 's32[2]{0}', space=sflag, size = 0x8, scoped, tag = 'scoped memory for tpu_custom_call.1']
    #allocation5 [shape = 'u8[131072]{0}', space=vmem, size = 0x20000, scoped, tag = 'input window, operand 1, single buffered']
    #allocation6 [shape = 's32[1]{0}', space=sflag, size = 0x4, scoped, tag = 'scoped memory for tpu_custom_call.1']
    #allocation7 [shape = 'u8[131072]{0}', space=vmem, size = 0x20000, scoped, tag = 'input window, operand 3, single buffered']
    #allocation8 [shape = 'u8[65536]{0}', space=vmem, size = 0x10000, scoped, tag = 'output window, operand 0']
    %10 = vsyncpa [#allocation3], 0
    %s11 = scalar_lea.sflag [#allocation3], 1
    %12 = vsyncpa %s11, 0
    %13 = vsyncpa [#allocation6], 0
    %14 = vsyncpa [#allocation4], 0
    %s15 = scalar_lea.sflag [#allocation4], 1
    %16 = vsyncpa %s15, 0
    loop: start=0, step=1, limit=4
    $region2: #{tpu_custom_call.1} parent=1 // loop_pre_header
      _
    $region3: #{tpu_custom_call.1} parent=1 // loop_header
      %s18 = sphi 0, %s22
      %p19 = scmp.ge.s32.totalorder %s18, 4
      %s28 = sphi 0, %s30
      %s31 = sphi 0, %s28
      %s32 = sphi 0, %s31
      %s48 = sphi 0, %s32
      %s52 = sphi 0, %s52
      %s54 = sphi 0, %s52
      %s55 = sphi 0, %s54
      %s69 = sphi 0, %s55
      %s73 = sphi 0, %s73
      %s75 = sphi 0, %s73
      %s76 = sphi 0, %s75
      %s90 = sphi 0, %s76
      %s94 = sphi 0, %s94
      %s96 = sphi 0, %s94
      %s97 = sphi 0, %s96
      %s111 = sphi 0, %s97
      %s115 = sphi 0, %s115
      %s117 = sphi 0, %s115
      %s118 = sphi 0, %s117
      %s132 = sphi 0, %s118
      %s138 = sphi 0, %s140
      %s141 = sphi 0, %s138
      %s142 = sphi 0, %s141
      %s158 = sphi 0, %s142
    $region4: #{tpu_custom_call.1} parent=1 // loop_header_branch
      %21 = sbr.rel (%p19) target = $region8
    $region5: #{tpu_custom_call.1} parent=1 // loop_body
      %s23 = ssub.s32 %s18, 1
      %s24 = ssub.s32 %s18, 2
      %s25 = sadd.s32 %s18, 1
      %s26 = ssub.s32 %s18, %s25
      %p27 = scmp.eq.s32.totalorder %s26, 0
      %s29 = sadd.s32 %s28, 1
      %s30 = scalar_select %p27, %s28, %s29
      %p33 = pneg %p27
      %p34 = scmp.eq.s32.totalorder %s18, 1
      %p35 = por %p33, %p34
      %p36 = scmp.ne.s32.totalorder %s28, %s31
      %p37 = scmp.eq.s32.totalorder %s18, 0
      %p38 = por %p36, %p37
      %p39 = scmp.ne.s32.totalorder %s28, %s31
      %p40 = scmp.eq.s32.totalorder %s23, 1
      %p41 = por %p39, %p40
      %p42 = scmp.ne.s32.totalorder %s31, %s32
      %p43 = scmp.eq.s32.totalorder %s23, 0
      %p44 = por %p42, %p43
      %p45 = scmp.ne.s32.totalorder %s31, %s32
      %p46 = scmp.eq.s32.totalorder %s24, 1
      %p47 = por %p45, %p46
      %p49 = scmp.ne.s32.totalorder %s32, %s48
      %p50 = scmp.eq.s32.totalorder %s24, 0
      %p51 = por %p49, %p50
      %s53 = sadd.s32 %s52, 1
      %p56 = scmp.eq.s32.totalorder %s18, 1
      %p57 = scmp.ne.s32.totalorder %s52, %s54
      %p58 = scmp.eq.s32.totalorder %s18, 0
      %p59 = por %p57, %p58
      %p60 = scmp.ne.s32.totalorder %s52, %s54
      %p61 = scmp.eq.s32.totalorder %s23, 1
      %p62 = por %p60, %p61
      %p63 = scmp.ne.s32.totalorder %s54, %s55
      %p64 = scmp.eq.s32.totalorder %s23, 0
      %p65 = por %p63, %p64
      %p66 = scmp.ne.s32.totalorder %s54, %s55
      %p67 = scmp.eq.s32.totalorder %s24, 1
      %p68 = por %p66, %p67
      %p70 = scmp.ne.s32.totalorder %s55, %s69
      %p71 = scmp.eq.s32.totalorder %s24, 0
      %p72 = por %p70, %p71
      %s74 = sadd.s32 %s73, 1
      %p77 = scmp.eq.s32.totalorder %s18, 1
      %p78 = scmp.ne.s32.totalorder %s73, %s75
      %p79 = scmp.eq.s32.totalorder %s18, 0
      %p80 = por %p78, %p79
      %p81 = scmp.ne.s32.totalorder %s73, %s75
      %p82 = scmp.eq.s32.totalorder %s23, 1
      %p83 = por %p81, %p82
      %p84 = scmp.ne.s32.totalorder %s75, %s76
      %p85 = scmp.eq.s32.totalorder %s23, 0
      %p86 = por %p84, %p85
      %p87 = scmp.ne.s32.totalorder %s75, %s76
      %p88 = scmp.eq.s32.totalorder %s24, 1
      %p89 = por %p87, %p88
      %p91 = scmp.ne.s32.totalorder %s76, %s90
      %p92 = scmp.eq.s32.totalorder %s24, 0
      %p93 = por %p91, %p92
      %s95 = sadd.s32 %s94, 1
      %p98 = scmp.eq.s32.totalorder %s18, 1
      %p99 = scmp.ne.s32.totalorder %s94, %s96
      %p100 = scmp.eq.s32.totalorder %s18, 0
      %p101 = por %p99, %p100
      %p102 = scmp.ne.s32.totalorder %s94, %s96
      %p103 = scmp.eq.s32.totalorder %s23, 1
      %p104 = por %p102, %p103
      %p105 = scmp.ne.s32.totalorder %s96, %s97
      %p106 = scmp.eq.s32.totalorder %s23, 0
      %p107 = por %p105, %p106
      %p108 = scmp.ne.s32.totalorder %s96, %s97
      %p109 = scmp.eq.s32.totalorder %s24, 1
      %p110 = por %p108, %p109
      %p112 = scmp.ne.s32.totalorder %s97, %s111
      %p113 = scmp.eq.s32.totalorder %s24, 0
      %p114 = por %p112, %p113
      %s116 = sadd.s32 %s115, 1
      %p119 = scmp.eq.s32.totalorder %s18, 1
      %p120 = scmp.ne.s32.totalorder %s115, %s117
      %p121 = scmp.eq.s32.totalorder %s18, 0
      %p122 = por %p120, %p121
      %p123 = scmp.ne.s32.totalorder %s115, %s117
      %p124 = scmp.eq.s32.totalorder %s23, 1
      %p125 = por %p123, %p124
      %p126 = scmp.ne.s32.totalorder %s117, %s118
      %p127 = scmp.eq.s32.totalorder %s23, 0
      %p128 = por %p126, %p127
      %p129 = scmp.ne.s32.totalorder %s117, %s118
      %p130 = scmp.eq.s32.totalorder %s24, 1
      %p131 = por %p129, %p130
      %p133 = scmp.ne.s32.totalorder %s118, %s132
      %p134 = scmp.eq.s32.totalorder %s24, 0
      %p135 = por %p133, %p134
      %s136 = ssub.s32 %s18, %s25
      %p137 = scmp.eq.s32.totalorder %s136, 0
      %s139 = sadd.s32 %s138, 1
      %s140 = scalar_select %p137, %s138, %s139
      %p143 = pneg %p137
      %p144 = scmp.eq.s32.totalorder %s18, 1
      %p145 = por %p143, %p144
      %p146 = scmp.ne.s32.totalorder %s138, %s141
      %p147 = scmp.eq.s32.totalorder %s18, 0
      %p148 = por %p146, %p147
      %p149 = scmp.ne.s32.totalorder %s138, %s141
      %p150 = scmp.eq.s32.totalorder %s23, 1
      %p151 = por %p149, %p150
      %p152 = scmp.ne.s32.totalorder %s141, %s142
      %p153 = scmp.eq.s32.totalorder %s23, 0
      %p154 = por %p152, %p153
      %p155 = scmp.ne.s32.totalorder %s141, %s142
      %p156 = scmp.eq.s32.totalorder %s24, 1
      %p157 = por %p155, %p156
      %p159 = scmp.ne.s32.totalorder %s142, %s158
      %p160 = scmp.eq.s32.totalorder %s24, 0
      %p161 = por %p159, %p160
      %p162 = scmp.le.s32.totalorder 1, %s18
      %p163 = scmp.lt.s32.totalorder %s18, 3
      %p164 = pnand %p162, %p163
      %p165 = pneg %p164
      // Predicated region
      $region9: #{tpu_custom_call.1} parent=5 // pred_check
        _
      $region10: #{tpu_custom_call.1} parent=5 // pred_check_branch
        %167 = sbr.rel (%p164) target = $region12
      $region11: #{tpu_custom_call.1} parent=5 // pred_region
        %s168 = ssub.s32 %s18, 1
        // Predicated region
        $region13: #{tpu_custom_call.1} parent=11 // pred_check
          %p169 = pneg %p65
        $region14: #{tpu_custom_call.1} parent=11 // pred_check_branch
          %171 = sbr.rel (%p169) target = $region16
        $region15: #{tpu_custom_call.1} parent=11 // pred_region
          %s173 = ssub.s32 4096, 4096
          %174 = vsyncadd [#allocation6], %s173
          %s175 = sshll.u32 [#allocation5], 4
          %s176 = int_to_ptr.vmem [resolvable:$true] %s175
          %181 = dma.hbm_to_vmem [thread:$0]  %s1, 4096, %s176, [#allocation6], 256, 256, 16
        $region16: #{tpu_custom_call.1} parent=11 // pred_fallthru
          _
        // Predicated region
        $region17: #{tpu_custom_call.1} parent=11 // pred_check
          %p182 = pneg %p86
        $region18: #{tpu_custom_call.1} parent=11 // pred_check_branch
          %184 = sbr.rel (%p182) target = $region20
        $region19: #{tpu_custom_call.1} parent=11 // pred_region
          _
        $region20: #{tpu_custom_call.1} parent=11 // pred_fallthru
          _
        // Predicated region
        $region21: #{tpu_custom_call.1} parent=11 // pred_check
          %p185 = pneg %p107
        $region22: #{tpu_custom_call.1} parent=11 // pred_check_branch
          %187 = sbr.rel (%p185) target = $region24
        $region23: #{tpu_custom_call.1} parent=11 // pred_region
          %s189 = ssub.s32 4096, 4096
          %190 = vsyncadd [#allocation6], %s189
          %s191 = sshll.u32 [#allocation7], 4
          %s192 = int_to_ptr.vmem [resolvable:$true] %s191
          %197 = dma.hbm_to_vmem [thread:$0]  %s3, 4096, %s192, [#allocation6], 64, 64, 4
        $region24: #{tpu_custom_call.1} parent=11 // pred_fallthru
          _
        // Predicated region
        $region25: #{tpu_custom_call.1} parent=11 // pred_check
          %p198 = pneg %p128
        $region26: #{tpu_custom_call.1} parent=11 // pred_check_branch
          %200 = sbr.rel (%p198) target = $region28
        $region27: #{tpu_custom_call.1} parent=11 // pred_region
          _
        $region28: #{tpu_custom_call.1} parent=11 // pred_fallthru
          _
      $region12: #{tpu_custom_call.1} parent=5 // pred_fallthru
        _
      %p201 = scmp.lt.s32.totalorder %s18, 2
      // Predicated region
      $region29: #{tpu_custom_call.1} parent=5 // pred_check
        %p202 = pneg %p201
      $region30: #{tpu_custom_call.1} parent=5 // pred_check_branch
        %204 = sbr.rel (%p202) target = $region32
      $region31: #{tpu_custom_call.1} parent=5 // pred_region
        // Predicated region
        $region33: #{tpu_custom_call.1} parent=31 // pred_check
          %p205 = pneg %p38
        $region34: #{tpu_custom_call.1} parent=31 // pred_check_branch
          %207 = sbr.rel (%p205) target = $region36
        $region35: #{tpu_custom_call.1} parent=31 // pred_region
          %s208 = sand.u32 %s28, 1
          %s209 = scalar_lea.sflag [#allocation3], %s208
          %s210 = sand.u32 %s28, 1
          %s211 = smul.addr %s210, 32
          %s212 = scalar_lea.vmem [#allocation2], %s211
          %s213 = smul.u32 8, %s18
          %s215 = ssub.s32 512, 512
          %216 = vsyncadd %s209, %s215
          %s217 = smul.addr %s213, 64
          %s218 = scalar_lea.hbm %s0, %s217
          %s219 = sshll.u32 %s212, 4
          %s220 = int_to_ptr.vmem [resolvable:$true] %s219
          %225 = dma.hbm_to_vmem [thread:$0]  %s218, 512, %s220, %s209, 64, 64, 4
        $region36: #{tpu_custom_call.1} parent=31 // pred_fallthru
          _
      $region32: #{tpu_custom_call.1} parent=5 // pred_fallthru
        _
      %p226 = scmp.le.s32.totalorder 1, %s18
      %p227 = scmp.lt.s32.totalorder %s18, 3
      %p228 = pnand %p226, %p227
      %p229 = pneg %p228
      // Predicated region
      $region37: #{tpu_custom_call.1} parent=5 // pred_check
        _
      $region38: #{tpu_custom_call.1} parent=5 // pred_check_branch
        %231 = sbr.rel (%p228) target = $region40
      $region39: #{tpu_custom_call.1} parent=5 // pred_region
        %s232 = ssub.s32 %s18, 1
        %s233 = sand.u32 %s31, 1
        %s234 = scalar_lea.sflag [#allocation3], %s233
        %s235 = sand.u32 %s31, 1
        %s236 = smul.addr %s235, 32
        %s237 = scalar_lea.vmem [#allocation2], %s236
        // Predicated region
        $region41: #{tpu_custom_call.1} parent=39 // pred_check
          %p238 = pneg %p44
        $region42: #{tpu_custom_call.1} parent=39 // pred_check_branch
          %240 = sbr.rel (%p238) target = $region44
        $region43: #{tpu_custom_call.1} parent=39 // pred_region
          %241 = dma.done %s234, 512
        $region44: #{tpu_custom_call.1} parent=39 // pred_fallthru
          _
        // Predicated region
        $region45: #{tpu_custom_call.1} parent=39 // pred_check
          %p242 = pneg %p65
        $region46: #{tpu_custom_call.1} parent=39 // pred_check_branch
          %244 = sbr.rel (%p242) target = $region48
        $region47: #{tpu_custom_call.1} parent=39 // pred_region
          %245 = dma.done [#allocation6], 4096
        $region48: #{tpu_custom_call.1} parent=39 // pred_fallthru
          _
        // Predicated region
        $region49: #{tpu_custom_call.1} parent=39 // pred_check
          %p246 = pneg %p107
        $region50: #{tpu_custom_call.1} parent=39 // pred_check_branch
          %248 = sbr.rel (%p246) target = $region52
        $region51: #{tpu_custom_call.1} parent=39 // pred_region
          %249 = dma.done [#allocation6], 4096
        $region52: #{tpu_custom_call.1} parent=39 // pred_fallthru
          _
        %s250 = sand.u32 %s31, 1
        %s251 = scalar_lea.sflag [#allocation3], %s250
        %s252 = sand.u32 %s31, 1
        %s253 = smul.addr %s252, 32
        %s254 = scalar_lea.vmem [#allocation2], %s253
        %p255 = pneg %p44
        %p256 = pneg %p41
        %p257 = pneg %p65
        %p258 = pneg %p62
        %p259 = pneg %p86
        %p260 = pneg %p83
        %p261 = pneg %p107
        %p262 = pneg %p104
        %p263 = pneg %p128
        %p264 = pneg %p125
        %p265 = pneg %p154
        %p266 = pneg %p151
        %s267 = sand.u32 %s141, 1
        %s268 = scalar_lea.sflag [#allocation4], %s267
        %s269 = sand.u32 %s141, 1
        %s270 = smul.addr %s269, 64
        %s271 = scalar_lea.vmem [#allocation8], %s270
        %s272 = smul.u32 8, %s23
        %s273 = smul.u32 8, %s23
        %v275 = vld [vmem:[%s237] sm:$0xf]
        %v276 = vld [vmem:[%s237 + $0x4] sm:$0xf]
        %v277 = vld [vmem:[%s237 + $0x8] sm:$0xf]
        %v278 = vld [vmem:[%s237 + $0xc] sm:$0xf]
        %v279 = vld [vmem:[%s237 + $0x10] sm:$0xf]
        %v280 = vld [vmem:[%s237 + $0x14] sm:$0xf]
        %v281 = vld [vmem:[%s237 + $0x18] sm:$0xf]
        %v282 = vld [vmem:[%s237 + $0x1c] sm:$0xf]
        %v283 = vld [vmem:[#allocation5] sm:$0xff]
        %v284 = vld [vmem:[#allocation5 + $0x8] sm:$0xff]
        %v285 = vld [vmem:[#allocation5 + $0x10] sm:$0xff]
        %v286 = vld [vmem:[#allocation5 + $0x18] sm:$0xff]
        %v287 = vld [vmem:[#allocation5 + $0x20] sm:$0xff]
        %v288 = vld [vmem:[#allocation5 + $0x28] sm:$0xff]
        %v289 = vld [vmem:[#allocation5 + $0x30] sm:$0xff]
        %v290 = vld [vmem:[#allocation5 + $0x38] sm:$0xff]
        %v291 = vld [vmem:[#allocation5 + $0x40] sm:$0xff]
        %v292 = vld [vmem:[#allocation5 + $0x48] sm:$0xff]
        %v293 = vld [vmem:[#allocation5 + $0x50] sm:$0xff]
        %v294 = vld [vmem:[#allocation5 + $0x58] sm:$0xff]
        %v295 = vld [vmem:[#allocation5 + $0x60] sm:$0xff]
        %v296 = vld [vmem:[#allocation5 + $0x68] sm:$0xff]
        %v297 = vld [vmem:[#allocation5 + $0x70] sm:$0xff]
        %v298 = vld [vmem:[#allocation5 + $0x78] sm:$0xff]
        %v299 = vld [vmem:[#allocation5 + $0x80] sm:$0xff]
        %v300 = vld [vmem:[#allocation5 + $0x88] sm:$0xff]
        %v301 = vld [vmem:[#allocation5 + $0x90] sm:$0xff]
        %v302 = vld [vmem:[#allocation5 + $0x98] sm:$0xff]
        %v303 = vld [vmem:[#allocation5 + $0xa0] sm:$0xff]
        %v304 = vld [vmem:[#allocation5 + $0xa8] sm:$0xff]
        %v305 = vld [vmem:[#allocation5 + $0xb0] sm:$0xff]
        %v306 = vld [vmem:[#allocation5 + $0xb8] sm:$0xff]
        %v307 = vld [vmem:[#allocation5 + $0xc0] sm:$0xff]
        %v308 = vld [vmem:[#allocation5 + $0xc8] sm:$0xff]
        %v309 = vld [vmem:[#allocation5 + $0xd0] sm:$0xff]
        %v310 = vld [vmem:[#allocation5 + $0xd8] sm:$0xff]
        %v311 = vld [vmem:[#allocation5 + $0xe0] sm:$0xff]
        %v312 = vld [vmem:[#allocation5 + $0xe8] sm:$0xff]
        %v313 = vld [vmem:[#allocation5 + $0xf0] sm:$0xff]
        %v314 = vld [vmem:[#allocation5 + $0xf8] sm:$0xff]
        %v315 = vld [vmem:[%s2] sm:$0xf]
        %v317 = vlaneseq
        %v318 = vshrl.u32 %v317, 7
        %v319 = vsub.s32 0, %v318
        %v320 = vrot.slane %v315, %v319
        %v321 = vlaneseq
        %v322 = vshrl.u32 %v321, 7
        %v323 = vsub.s32 1, %v322
        %v324 = vrot.slane %v315, %v323
        %v325 = vlaneseq
        %v326 = vshrl.u32 %v325, 7
        %v327 = vsub.s32 2, %v326
        %v328 = vrot.slane %v315, %v327
        %v329 = vlaneseq
        %v330 = vshrl.u32 %v329, 7
        %v331 = vsub.s32 3, %v330
        %v332 = vrot.slane %v315, %v331
        %v345 = vunpack.c.l.b16 %v275
        %v346 = vunpack.c.l.b16 %v276
        %v347 = vunpack.c.l.b16 %v277
        %v348 = vunpack.c.l.b16 %v278
        %v349 = vunpack.c.l.b16 %v279
        %v350 = vunpack.c.l.b16 %v280
        %v351 = vunpack.c.l.b16 %v281
        %v352 = vunpack.c.l.b16 %v282
        %v353 = vpack.c.b16 %v346, %v345
        %v354 = vpack.c.b16 %v348, %v347
        %v355 = vpack.c.b16 %v350, %v349
        %v356 = vpack.c.b16 %v352, %v351
        %v393 = vunpack.c.l.b16 %v283
        %v394 = vunpack.c.h.b16 %v283
        %v395 = vunpack.c.l.b16 %v284
        %v396 = vunpack.c.h.b16 %v284
        %v397 = vunpack.c.l.b16 %v285
        %v398 = vunpack.c.h.b16 %v285
        %v399 = vunpack.c.l.b16 %v286
        %v400 = vunpack.c.h.b16 %v286
        %v401 = vunpack.c.l.b16 %v287
        %v402 = vunpack.c.h.b16 %v287
        %v403 = vunpack.c.l.b16 %v288
        %v404 = vunpack.c.h.b16 %v288
        %v405 = vunpack.c.l.b16 %v289
        %v406 = vunpack.c.h.b16 %v289
        %v407 = vunpack.c.l.b16 %v290
        %v408 = vunpack.c.h.b16 %v290
        %v409 = vunpack.c.l.b16 %v291
        %v410 = vunpack.c.h.b16 %v291
        %v411 = vunpack.c.l.b16 %v292
        %v412 = vunpack.c.h.b16 %v292
        %v413 = vunpack.c.l.b16 %v293
        %v414 = vunpack.c.h.b16 %v293
        %v415 = vunpack.c.l.b16 %v294
        %v416 = vunpack.c.h.b16 %v294
        %v417 = vunpack.c.l.b16 %v295
        %v418 = vunpack.c.h.b16 %v295
        %v419 = vunpack.c.l.b16 %v296
        %v420 = vunpack.c.h.b16 %v296
        %v421 = vunpack.c.l.b16 %v297
        %v422 = vunpack.c.h.b16 %v297
        %v423 = vunpack.c.l.b16 %v298
        %v424 = vunpack.c.h.b16 %v298
        %v425 = vunpack.c.l.b16 %v299
        %v426 = vunpack.c.h.b16 %v299
        %v427 = vunpack.c.l.b16 %v300
        %v428 = vunpack.c.h.b16 %v300
        %v429 = vunpack.c.l.b16 %v301
        %v430 = vunpack.c.h.b16 %v301
        %v431 = vunpack.c.l.b16 %v302
        %v432 = vunpack.c.h.b16 %v302
        %v433 = vunpack.c.l.b16 %v303
        %v434 = vunpack.c.h.b16 %v303
        %v435 = vunpack.c.l.b16 %v304
        %v436 = vunpack.c.h.b16 %v304
        %v437 = vunpack.c.l.b16 %v305
        %v438 = vunpack.c.h.b16 %v305
        %v439 = vunpack.c.l.b16 %v306
        %v440 = vunpack.c.h.b16 %v306
        %v441 = vunpack.c.l.b16 %v307
        %v442 = vunpack.c.h.b16 %v307
        %v443 = vunpack.c.l.b16 %v308
        %v444 = vunpack.c.h.b16 %v308
        %v445 = vunpack.c.l.b16 %v309
        %v446 = vunpack.c.h.b16 %v309
        %v447 = vunpack.c.l.b16 %v310
        %v448 = vunpack.c.h.b16 %v310
        %v449 = vunpack.c.l.b16 %v311
        %v450 = vunpack.c.h.b16 %v311
        %v451 = vunpack.c.l.b16 %v312
        %v452 = vunpack.c.h.b16 %v312
        %v453 = vunpack.c.l.b16 %v313
        %v454 = vunpack.c.h.b16 %v313
        %v455 = vunpack.c.l.b16 %v314
        %v456 = vunpack.c.h.b16 %v314
        %v457 = vpack.c.b16 %v397, %v393
        %v458 = vpack.c.b16 %v398, %v394
        %v459 = vpack.c.b16 %v399, %v395
        %v460 = vpack.c.b16 %v400, %v396
        %v461 = vpack.c.b16 %v405, %v401
        %v462 = vpack.c.b16 %v406, %v402
        %v463 = vpack.c.b16 %v407, %v403
        %v464 = vpack.c.b16 %v408, %v404
        %v465 = vpack.c.b16 %v413, %v409
        %v466 = vpack.c.b16 %v414, %v410
        %v467 = vpack.c.b16 %v415, %v411
        %v468 = vpack.c.b16 %v416, %v412
        %v469 = vpack.c.b16 %v421, %v417
        %v470 = vpack.c.b16 %v422, %v418
        %v471 = vpack.c.b16 %v423, %v419
        %v472 = vpack.c.b16 %v424, %v420
        %v473 = vpack.c.b16 %v429, %v425
        %v474 = vpack.c.b16 %v430, %v426
        %v475 = vpack.c.b16 %v431, %v427
        %v476 = vpack.c.b16 %v432, %v428
        %v477 = vpack.c.b16 %v437, %v433
        %v478 = vpack.c.b16 %v438, %v434
        %v479 = vpack.c.b16 %v439, %v435
        %v480 = vpack.c.b16 %v440, %v436
        %v481 = vpack.c.b16 %v445, %v441
        %v482 = vpack.c.b16 %v446, %v442
        %v483 = vpack.c.b16 %v447, %v443
        %v484 = vpack.c.b16 %v448, %v444
        %v485 = vpack.c.b16 %v453, %v449
        %v486 = vpack.c.b16 %v454, %v450
        %v487 = vpack.c.b16 %v455, %v451
        %v488 = vpack.c.b16 %v456, %v452
        %521 = vmatprep.subr.bf16.mxu0 %v458
        %522 = vmatpush1.bf16.msra.mxu0 %v457
        %523 = vmatprep.subr.bf16.mxu0 %v462
        %524 = vmatpush1.bf16.msra.mxu0 %v461
        %525 = vmatprep.subr.bf16.mxu0 %v466
        %526 = vmatpush1.bf16.msra.mxu0 %v465
        %527 = vmatprep.subr.bf16.mxu0 %v470
        %528 = vmatpush1.bf16.msra.mxu0 %v469
        %529 = vmatprep.subr.bf16.mxu0 %v474
        %530 = vmatpush1.bf16.msra.mxu0 %v473
        %531 = vmatprep.subr.bf16.mxu0 %v478
        %532 = vmatpush1.bf16.msra.mxu0 %v477
        %533 = vmatprep.subr.bf16.mxu0 %v482
        %534 = vmatpush1.bf16.msra.mxu0 %v481
        %535 = vmatprep.subr.bf16.mxu0 %v486
        %536 = vmatpush1.bf16.msra.mxu0 %v485
        %537 = vmatprep.subr.bf16.mxu0 0
        %538 = vmatpush1.bf16.msra.mxu0 0
        %539 = vmatprep.subr.bf16.mxu0 0
        %540 = vmatpush1.bf16.msra.mxu0 0
        %541 = vmatprep.subr.bf16.mxu0 0
        %542 = vmatpush1.bf16.msra.mxu0 0
        %543 = vmatprep.subr.bf16.mxu0 0
        %544 = vmatpush1.bf16.msra.mxu0 0
        %545 = vmatprep.subr.bf16.mxu0 0
        %546 = vmatpush1.bf16.msra.mxu0 0
        %547 = vmatprep.subr.bf16.mxu0 0
        %548 = vmatpush1.bf16.msra.mxu0 0
        %549 = vmatprep.subr.bf16.mxu0 0
        %550 = vmatpush1.bf16.msra.mxu0 0
        %551 = vmatprep.subr.bf16.mxu0 0
        %552 = vmatpush1.bf16.msra.mxu0 0
        %553 = vmatprep.mubr.bf16.mxu0 0
        %554 = vmatmul.mubr.bf16.gmra.mrb[0].mxu0 %v353
        %v555 = vpop.f32.mrb[0].mxu0
        %v556 = vadd.f32 %v320, %v555
        %v557 = vpop.f32.mrb[0].mxu0
        %v558 = vadd.f32 %v324, %v557
        %v559 = vpop.f32.mrb[0].mxu0
        %v560 = vadd.f32 %v320, %v559
        %v561 = vpop.f32.mrb[0].mxu0
        %v562 = vadd.f32 %v324, %v561
        %563 = vmatprep.mubr.bf16.mxu0 0
        %564 = vmatmul.mubr.bf16.gmra.mrb[0].mxu0 %v354
        %v565 = vpop.f32.mrb[0].mxu0
        %v566 = vadd.f32 %v320, %v565
        %v567 = vpop.f32.mrb[0].mxu0
        %v568 = vadd.f32 %v324, %v567
        %v569 = vpop.f32.mrb[0].mxu0
        %v570 = vadd.f32 %v320, %v569
        %v571 = vpop.f32.mrb[0].mxu0
        %v572 = vadd.f32 %v324, %v571
        %573 = vmatprep.mubr.bf16.mxu0 0
        %574 = vmatmul.mubr.bf16.gmra.mrb[0].mxu0 %v355
        %v575 = vpop.f32.mrb[0].mxu0
        %v576 = vadd.f32 %v320, %v575
        %v577 = vpop.f32.mrb[0].mxu0
        %v578 = vadd.f32 %v324, %v577
        %v579 = vpop.f32.mrb[0].mxu0
        %v580 = vadd.f32 %v320, %v579
        %v581 = vpop.f32.mrb[0].mxu0
        %v582 = vadd.f32 %v324, %v581
        %583 = vmatprep.mubr.bf16.mxu0 0
        %584 = vmatmul.mubr.bf16.gmra.mrb[0].mxu0 %v356
        %v585 = vpop.f32.mrb[0].mxu0
        %v586 = vadd.f32 %v320, %v585
        %v587 = vpop.f32.mrb[0].mxu0
        %v588 = vadd.f32 %v324, %v587
        %v589 = vpop.f32.mrb[0].mxu0
        %v590 = vadd.f32 %v320, %v589
        %v591 = vpop.f32.mrb[0].mxu0
        %v592 = vadd.f32 %v324, %v591
        %593 = vdwg.mxu0
        %594 = vmatprep.subr.bf16.mxu0 %v460
        %595 = vmatpush1.bf16.msra.mxu0 %v459
        %596 = vmatprep.subr.bf16.mxu0 %v464
        %597 = vmatpush1.bf16.msra.mxu0 %v463
        %598 = vmatprep.subr.bf16.mxu0 %v468
        %599 = vmatpush1.bf16.msra.mxu0 %v467
        %600 = vmatprep.subr.bf16.mxu0 %v472
        %601 = vmatpush1.bf16.msra.mxu0 %v471
        %602 = vmatprep.subr.bf16.mxu0 %v476
        %603 = vmatpush1.bf16.msra.mxu0 %v475
        %604 = vmatprep.subr.bf16.mxu0 %v480
        %605 = vmatpush1.bf16.msra.mxu0 %v479
        %606 = vmatprep.subr.bf16.mxu0 %v484
        %607 = vmatpush1.bf16.msra.mxu0 %v483
        %608 = vmatprep.subr.bf16.mxu0 %v488
        %609 = vmatpush1.bf16.msra.mxu0 %v487
        %610 = vmatprep.subr.bf16.mxu0 0
        %611 = vmatpush1.bf16.msra.mxu0 0
        %612 = vmatprep.subr.bf16.mxu0 0
        %613 = vmatpush1.bf16.msra.mxu0 0
        %614 = vmatprep.subr.bf16.mxu0 0
        %615 = vmatpush1.bf16.msra.mxu0 0
        %616 = vmatprep.subr.bf16.mxu0 0
        %617 = vmatpush1.bf16.msra.mxu0 0
        %618 = vmatprep.subr.bf16.mxu0 0
        %619 = vmatpush1.bf16.msra.mxu0 0
        %620 = vmatprep.subr.bf16.mxu0 0
        %621 = vmatpush1.bf16.msra.mxu0 0
        %622 = vmatprep.subr.bf16.mxu0 0
        %623 = vmatpush1.bf16.msra.mxu0 0
        %624 = vmatprep.subr.bf16.mxu0 0
        %625 = vmatpush1.bf16.msra.mxu0 0
        %626 = vmatprep.mubr.bf16.mxu0 0
        %627 = vmatmul.mubr.bf16.gmra.mrb[0].mxu0 %v353
        %v628 = vpop.f32.mrb[0].mxu0
        %v629 = vadd.f32 %v328, %v628
        %v630 = vpop.f32.mrb[0].mxu0
        %v631 = vadd.f32 %v332, %v630
        %v632 = vpop.f32.mrb[0].mxu0
        %v633 = vadd.f32 %v328, %v632
        %v634 = vpop.f32.mrb[0].mxu0
        %v635 = vadd.f32 %v332, %v634
        %636 = vmatprep.mubr.bf16.mxu0 0
        %637 = vmatmul.mubr.bf16.gmra.mrb[0].mxu0 %v354
        %v638 = vpop.f32.mrb[0].mxu0
        %v639 = vadd.f32 %v328, %v638
        %v640 = vpop.f32.mrb[0].mxu0
        %v641 = vadd.f32 %v332, %v640
        %v642 = vpop.f32.mrb[0].mxu0
        %v643 = vadd.f32 %v328, %v642
        %v644 = vpop.f32.mrb[0].mxu0
        %v645 = vadd.f32 %v332, %v644
        %646 = vmatprep.mubr.bf16.mxu0 0
        %647 = vmatmul.mubr.bf16.gmra.mrb[0].mxu0 %v355
        %v648 = vpop.f32.mrb[0].mxu0
        %v649 = vadd.f32 %v328, %v648
        %v650 = vpop.f32.mrb[0].mxu0
        %v651 = vadd.f32 %v332, %v650
        %v652 = vpop.f32.mrb[0].mxu0
        %v653 = vadd.f32 %v328, %v652
        %v654 = vpop.f32.mrb[0].mxu0
        %v655 = vadd.f32 %v332, %v654
        %656 = vmatprep.mubr.bf16.mxu0 0
        %657 = vmatmul.mubr.bf16.gmra.mrb[0].mxu0 %v356
        %v658 = vpop.f32.mrb[0].mxu0
        %v659 = vadd.f32 %v328, %v658
        %v660 = vpop.f32.mrb[0].mxu0
        %v661 = vadd.f32 %v332, %v660
        %v662 = vpop.f32.mrb[0].mxu0
        %v663 = vadd.f32 %v328, %v662
        %v664 = vpop.f32.mrb[0].mxu0
        %v665 = vadd.f32 %v332, %v664
        %666 = vdwg.mxu0
        %v667 = vmax.f32 %v556, 0.0
        %v668 = vmax.f32 %v558, 0.0
        %v669 = vmax.f32 %v629, 0.0
        %v670 = vmax.f32 %v631, 0.0
        %v671 = vmax.f32 %v560, 0.0
        %v672 = vmax.f32 %v562, 0.0
        %v673 = vmax.f32 %v633, 0.0
        %v674 = vmax.f32 %v635, 0.0
        %v675 = vmax.f32 %v566, 0.0
        %v676 = vmax.f32 %v568, 0.0
        %v677 = vmax.f32 %v639, 0.0
        %v678 = vmax.f32 %v641, 0.0
        %v679 = vmax.f32 %v570, 0.0
        %v680 = vmax.f32 %v572, 0.0
        %v681 = vmax.f32 %v643, 0.0
        %v682 = vmax.f32 %v645, 0.0
        %v683 = vmax.f32 %v576, 0.0
        %v684 = vmax.f32 %v578, 0.0
        %v685 = vmax.f32 %v649, 0.0
        %v686 = vmax.f32 %v651, 0.0
        %v687 = vmax.f32 %v580, 0.0
        %v688 = vmax.f32 %v582, 0.0
        %v689 = vmax.f32 %v653, 0.0
        %v690 = vmax.f32 %v655, 0.0
        %v691 = vmax.f32 %v586, 0.0
        %v692 = vmax.f32 %v588, 0.0
        %v693 = vmax.f32 %v659, 0.0
        %v694 = vmax.f32 %v661, 0.0
        %v695 = vmax.f32 %v590, 0.0
        %v696 = vmax.f32 %v592, 0.0
        %v697 = vmax.f32 %v663, 0.0
        %v698 = vmax.f32 %v665, 0.0
        %v699 = vpack.c.bf16 %v671, %v667
        %v700 = vpack.c.bf16 %v672, %v668
        %v701 = vpack.c.bf16 %v673, %v669
        %v702 = vpack.c.bf16 %v674, %v670
        %v703 = vpack.c.bf16 %v679, %v675
        %v704 = vpack.c.bf16 %v680, %v676
        %v705 = vpack.c.bf16 %v681, %v677
        %v706 = vpack.c.bf16 %v682, %v678
        %v707 = vpack.c.bf16 %v687, %v683
        %v708 = vpack.c.bf16 %v688, %v684
        %v709 = vpack.c.bf16 %v689, %v685
        %v710 = vpack.c.bf16 %v690, %v686
        %v711 = vpack.c.bf16 %v695, %v691
        %v712 = vpack.c.bf16 %v696, %v692
        %v713 = vpack.c.bf16 %v697, %v693
        %v714 = vpack.c.bf16 %v698, %v694
        %v715 = vld [vmem:[#allocation7] sm:$0xf]
        %v716 = vld [vmem:[#allocation7 + $0x4] sm:$0xf]
        %v717 = vld [vmem:[#allocation7 + $0x8] sm:$0xf]
        %v718 = vld [vmem:[#allocation7 + $0xc] sm:$0xf]
        %v719 = vld [vmem:[#allocation7 + $0x10] sm:$0xf]
        %v720 = vld [vmem:[#allocation7 + $0x14] sm:$0xf]
        %v721 = vld [vmem:[#allocation7 + $0x18] sm:$0xf]
        %v722 = vld [vmem:[#allocation7 + $0x1c] sm:$0xf]
        %v723 = vld [vmem:[#allocation7 + $0x20] sm:$0xf]
        %v724 = vld [vmem:[#allocation7 + $0x24] sm:$0xf]
        %v725 = vld [vmem:[#allocation7 + $0x28] sm:$0xf]
        %v726 = vld [vmem:[#allocation7 + $0x2c] sm:$0xf]
        %v727 = vld [vmem:[#allocation7 + $0x30] sm:$0xf]
        %v728 = vld [vmem:[#allocation7 + $0x34] sm:$0xf]
        %v729 = vld [vmem:[#allocation7 + $0x38] sm:$0xf]
        %v730 = vld [vmem:[#allocation7 + $0x3c] sm:$0xf]
        %v731 = vld [vmem:[#allocation7 + $0x40] sm:$0xf]
        %v732 = vld [vmem:[#allocation7 + $0x44] sm:$0xf]
        %v733 = vld [vmem:[#allocation7 + $0x48] sm:$0xf]
        %v734 = vld [vmem:[#allocation7 + $0x4c] sm:$0xf]
        %v735 = vld [vmem:[#allocation7 + $0x50] sm:$0xf]
        %v736 = vld [vmem:[#allocation7 + $0x54] sm:$0xf]
        %v737 = vld [vmem:[#allocation7 + $0x58] sm:$0xf]
        %v738 = vld [vmem:[#allocation7 + $0x5c] sm:$0xf]
        %v739 = vld [vmem:[#allocation7 + $0x60] sm:$0xf]
        %v740 = vld [vmem:[#allocation7 + $0x64] sm:$0xf]
        %v741 = vld [vmem:[#allocation7 + $0x68] sm:$0xf]
        %v742 = vld [vmem:[#allocation7 + $0x6c] sm:$0xf]
        %v743 = vld [vmem:[#allocation7 + $0x70] sm:$0xf]
        %v744 = vld [vmem:[#allocation7 + $0x74] sm:$0xf]
        %v745 = vld [vmem:[#allocation7 + $0x78] sm:$0xf]
        %v746 = vld [vmem:[#allocation7 + $0x7c] sm:$0xf]
        %v747 = vld [vmem:[#allocation7 + $0x80] sm:$0xf]
        %v748 = vld [vmem:[#allocation7 + $0x84] sm:$0xf]
        %v749 = vld [vmem:[#allocation7 + $0x88] sm:$0xf]
        %v750 = vld [vmem:[#allocation7 + $0x8c] sm:$0xf]
        %v751 = vld [vmem:[#allocation7 + $0x90] sm:$0xf]
        %v752 = vld [vmem:[#allocation7 + $0x94] sm:$0xf]
        %v753 = vld [vmem:[#allocation7 + $0x98] sm:$0xf]
        %v754 = vld [vmem:[#allocation7 + $0x9c] sm:$0xf]
        %v755 = vld [vmem:[#allocation7 + $0xa0] sm:$0xf]
        %v756 = vld [vmem:[#allocation7 + $0xa4] sm:$0xf]
        %v757 = vld [vmem:[#allocation7 + $0xa8] sm:$0xf]
        %v758 = vld [vmem:[#allocation7 + $0xac] sm:$0xf]
        %v759 = vld [vmem:[#allocation7 + $0xb0] sm:$0xf]
        %v760 = vld [vmem:[#allocation7 + $0xb4] sm:$0xf]
        %v761 = vld [vmem:[#allocation7 + $0xb8] sm:$0xf]
        %v762 = vld [vmem:[#allocation7 + $0xbc] sm:$0xf]
        %v763 = vld [vmem:[#allocation7 + $0xc0] sm:$0xf]
        %v764 = vld [vmem:[#allocation7 + $0xc4] sm:$0xf]
        %v765 = vld [vmem:[#allocation7 + $0xc8] sm:$0xf]
        %v766 = vld [vmem:[#allocation7 + $0xcc] sm:$0xf]
        %v767 = vld [vmem:[#allocation7 + $0xd0] sm:$0xf]
        %v768 = vld [vmem:[#allocation7 + $0xd4] sm:$0xf]
        %v769 = vld [vmem:[#allocation7 + $0xd8] sm:$0xf]
        %v770 = vld [vmem:[#allocation7 + $0xdc] sm:$0xf]
        %v771 = vld [vmem:[#allocation7 + $0xe0] sm:$0xf]
        %v772 = vld [vmem:[#allocation7 + $0xe4] sm:$0xf]
        %v773 = vld [vmem:[#allocation7 + $0xe8] sm:$0xf]
        %v774 = vld [vmem:[#allocation7 + $0xec] sm:$0xf]
        %v775 = vld [vmem:[#allocation7 + $0xf0] sm:$0xf]
        %v776 = vld [vmem:[#allocation7 + $0xf4] sm:$0xf]
        %v777 = vld [vmem:[#allocation7 + $0xf8] sm:$0xf]
        %v778 = vld [vmem:[#allocation7 + $0xfc] sm:$0xf]
        %v779 = vld [vmem:[%s4] sm:$0x1]
        %v781 = vlaneseq
        %v782 = vshrl.u32 %v781, 7
        %v783 = vsub.s32 0, %v782
        %v784 = vrot.slane %v779, %v783
        %v850 = vunpack.c.l.b16 %v715
        %v851 = vunpack.c.l.b16 %v716
        %v852 = vunpack.c.l.b16 %v717
        %v853 = vunpack.c.l.b16 %v718
        %v854 = vunpack.c.l.b16 %v719
        %v855 = vunpack.c.l.b16 %v720
        %v856 = vunpack.c.l.b16 %v721
        %v857 = vunpack.c.l.b16 %v722
        %v858 = vunpack.c.l.b16 %v723
        %v859 = vunpack.c.l.b16 %v724
        %v860 = vunpack.c.l.b16 %v725
        %v861 = vunpack.c.l.b16 %v726
        %v862 = vunpack.c.l.b16 %v727
        %v863 = vunpack.c.l.b16 %v728
        %v864 = vunpack.c.l.b16 %v729
        %v865 = vunpack.c.l.b16 %v730
        %v866 = vunpack.c.l.b16 %v731
        %v867 = vunpack.c.l.b16 %v732
        %v868 = vunpack.c.l.b16 %v733
        %v869 = vunpack.c.l.b16 %v734
        %v870 = vunpack.c.l.b16 %v735
        %v871 = vunpack.c.l.b16 %v736
        %v872 = vunpack.c.l.b16 %v737
        %v873 = vunpack.c.l.b16 %v738
        %v874 = vunpack.c.l.b16 %v739
        %v875 = vunpack.c.l.b16 %v740
        %v876 = vunpack.c.l.b16 %v741
        %v877 = vunpack.c.l.b16 %v742
        %v878 = vunpack.c.l.b16 %v743
        %v879 = vunpack.c.l.b16 %v744
        %v880 = vunpack.c.l.b16 %v745
        %v881 = vunpack.c.l.b16 %v746
        %v882 = vunpack.c.l.b16 %v747
        %v883 = vunpack.c.l.b16 %v748
        %v884 = vunpack.c.l.b16 %v749
        %v885 = vunpack.c.l.b16 %v750
        %v886 = vunpack.c.l.b16 %v751
        %v887 = vunpack.c.l.b16 %v752
        %v888 = vunpack.c.l.b16 %v753
        %v889 = vunpack.c.l.b16 %v754
        %v890 = vunpack.c.l.b16 %v755
        %v891 = vunpack.c.l.b16 %v756
        %v892 = vunpack.c.l.b16 %v757
        %v893 = vunpack.c.l.b16 %v758
        %v894 = vunpack.c.l.b16 %v759
        %v895 = vunpack.c.l.b16 %v760
        %v896 = vunpack.c.l.b16 %v761
        %v897 = vunpack.c.l.b16 %v762
        %v898 = vunpack.c.l.b16 %v763
        %v899 = vunpack.c.l.b16 %v764
        %v900 = vunpack.c.l.b16 %v765
        %v901 = vunpack.c.l.b16 %v766
        %v902 = vunpack.c.l.b16 %v767
        %v903 = vunpack.c.l.b16 %v768
        %v904 = vunpack.c.l.b16 %v769
        %v905 = vunpack.c.l.b16 %v770
        %v906 = vunpack.c.l.b16 %v771
        %v907 = vunpack.c.l.b16 %v772
        %v908 = vunpack.c.l.b16 %v773
        %v909 = vunpack.c.l.b16 %v774
        %v910 = vunpack.c.l.b16 %v775
        %v911 = vunpack.c.l.b16 %v776
        %v912 = vunpack.c.l.b16 %v777
        %v913 = vunpack.c.l.b16 %v778
        %v914 = vpack.c.b16 %v851, %v850
        %v915 = vpack.c.b16 %v853, %v852
        %v916 = vpack.c.b16 %v855, %v854
        %v917 = vpack.c.b16 %v857, %v856
        %v918 = vpack.c.b16 %v859, %v858
        %v919 = vpack.c.b16 %v861, %v860
        %v920 = vpack.c.b16 %v863, %v862
        %v921 = vpack.c.b16 %v865, %v864
        %v922 = vpack.c.b16 %v867, %v866
        %v923 = vpack.c.b16 %v869, %v868
        %v924 = vpack.c.b16 %v871, %v870
        %v925 = vpack.c.b16 %v873, %v872
        %v926 = vpack.c.b16 %v875, %v874
        %v927 = vpack.c.b16 %v877, %v876
        %v928 = vpack.c.b16 %v879, %v878
        %v929 = vpack.c.b16 %v881, %v880
        %v930 = vpack.c.b16 %v883, %v882
        %v931 = vpack.c.b16 %v885, %v884
        %v932 = vpack.c.b16 %v887, %v886
        %v933 = vpack.c.b16 %v889, %v888
        %v934 = vpack.c.b16 %v891, %v890
        %v935 = vpack.c.b16 %v893, %v892
        %v936 = vpack.c.b16 %v895, %v894
        %v937 = vpack.c.b16 %v897, %v896
        %v938 = vpack.c.b16 %v899, %v898
        %v939 = vpack.c.b16 %v901, %v900
        %v940 = vpack.c.b16 %v903, %v902
        %v941 = vpack.c.b16 %v905, %v904
        %v942 = vpack.c.b16 %v907, %v906
        %v943 = vpack.c.b16 %v909, %v908
        %v944 = vpack.c.b16 %v911, %v910
        %v945 = vpack.c.b16 %v913, %v912
        %978 = vmatprep.subr.bf16.mxu0 0
        %979 = vmatpush1.bf16.msra.mxu0 %v914
        %980 = vmatprep.subr.bf16.mxu0 0
        %981 = vmatpush1.bf16.msra.mxu0 %v915
        %982 = vmatprep.subr.bf16.mxu0 0
        %983 = vmatpush1.bf16.msra.mxu0 %v916
        %984 = vmatprep.subr.bf16.mxu0 0
        %985 = vmatpush1.bf16.msra.mxu0 %v917
        %986 = vmatprep.subr.bf16.mxu0 0
        %987 = vmatpush1.bf16.msra.mxu0 %v918
        %988 = vmatprep.subr.bf16.mxu0 0
        %989 = vmatpush1.bf16.msra.mxu0 %v919
        %990 = vmatprep.subr.bf16.mxu0 0
        %991 = vmatpush1.bf16.msra.mxu0 %v920
        %992 = vmatprep.subr.bf16.mxu0 0
        %993 = vmatpush1.bf16.msra.mxu0 %v921
        %994 = vmatprep.subr.bf16.mxu0 0
        %995 = vmatpush1.bf16.msra.mxu0 %v922
        %996 = vmatprep.subr.bf16.mxu0 0
        %997 = vmatpush1.bf16.msra.mxu0 %v923
        %998 = vmatprep.subr.bf16.mxu0 0
        %999 = vmatpush1.bf16.msra.mxu0 %v924
        %1000 = vmatprep.subr.bf16.mxu0 0
        %1001 = vmatpush1.bf16.msra.mxu0 %v925
        %1002 = vmatprep.subr.bf16.mxu0 0
        %1003 = vmatpush1.bf16.msra.mxu0 %v926
        %1004 = vmatprep.subr.bf16.mxu0 0
        %1005 = vmatpush1.bf16.msra.mxu0 %v927
        %1006 = vmatprep.subr.bf16.mxu0 0
        %1007 = vmatpush1.bf16.msra.mxu0 %v928
        %1008 = vmatprep.subr.bf16.mxu0 0
        %1009 = vmatpush1.bf16.msra.mxu0 %v929
        %1010 = vmatprep.mubr.bf16.mxu0 %v700
        %1011 = vmatmul.mubr.bf16.gmra.mrb[0].mxu0 %v699
        %v1012 = vpop.f32.mrb[0].mxu0
        %v1013 = vadd.f32 %v784, %v1012
        %v1014 = vpop.f32.mrb[0].mxu0
        %v1015 = vpop.f32.mrb[0].mxu0
        %v1016 = vadd.f32 %v784, %v1015
        %v1017 = vpop.f32.mrb[0].mxu0
        %1018 = vmatprep.mubr.bf16.mxu0 %v704
        %1019 = vmatmul.mubr.bf16.gmra.mrb[0].mxu0 %v703
        %v1020 = vpop.f32.mrb[0].mxu0
        %v1021 = vadd.f32 %v784, %v1020
        %v1022 = vpop.f32.mrb[0].mxu0
        %v1023 = vpop.f32.mrb[0].mxu0
        %v1024 = vadd.f32 %v784, %v1023
        %v1025 = vpop.f32.mrb[0].mxu0
        %1026 = vmatprep.mubr.bf16.mxu0 %v708
        %1027 = vmatmul.mubr.bf16.gmra.mrb[0].mxu0 %v707
        %v1028 = vpop.f32.mrb[0].mxu0
        %v1029 = vadd.f32 %v784, %v1028
        %v1030 = vpop.f32.mrb[0].mxu0
        %v1031 = vpop.f32.mrb[0].mxu0
        %v1032 = vadd.f32 %v784, %v1031
        %v1033 = vpop.f32.mrb[0].mxu0
        %1034 = vmatprep.mubr.bf16.mxu0 %v712
        %1035 = vmatmul.mubr.bf16.gmra.mrb[0].mxu0 %v711
        %v1036 = vpop.f32.mrb[0].mxu0
        %v1037 = vadd.f32 %v784, %v1036
        %v1038 = vpop.f32.mrb[0].mxu0
        %v1039 = vpop.f32.mrb[0].mxu0
        %v1040 = vadd.f32 %v784, %v1039
        %v1041 = vpop.f32.mrb[0].mxu0
        %1042 = vdwg.mxu0
        %1043 = vmatprep.subr.bf16.mxu0 0
        %1044 = vmatpush1.bf16.msra.mxu0 %v930
        %1045 = vmatprep.subr.bf16.mxu0 0
        %1046 = vmatpush1.bf16.msra.mxu0 %v931
        %1047 = vmatprep.subr.bf16.mxu0 0
        %1048 = vmatpush1.bf16.msra.mxu0 %v932
        %1049 = vmatprep.subr.bf16.mxu0 0
        %1050 = vmatpush1.bf16.msra.mxu0 %v933
        %1051 = vmatprep.subr.bf16.mxu0 0
        %1052 = vmatpush1.bf16.msra.mxu0 %v934
        %1053 = vmatprep.subr.bf16.mxu0 0
        %1054 = vmatpush1.bf16.msra.mxu0 %v935
        %1055 = vmatprep.subr.bf16.mxu0 0
        %1056 = vmatpush1.bf16.msra.mxu0 %v936
        %1057 = vmatprep.subr.bf16.mxu0 0
        %1058 = vmatpush1.bf16.msra.mxu0 %v937
        %1059 = vmatprep.subr.bf16.mxu0 0
        %1060 = vmatpush1.bf16.msra.mxu0 %v938
        %1061 = vmatprep.subr.bf16.mxu0 0
        %1062 = vmatpush1.bf16.msra.mxu0 %v939
        %1063 = vmatprep.subr.bf16.mxu0 0
        %1064 = vmatpush1.bf16.msra.mxu0 %v940
        %1065 = vmatprep.subr.bf16.mxu0 0
        %1066 = vmatpush1.bf16.msra.mxu0 %v941
        %1067 = vmatprep.subr.bf16.mxu0 0
        %1068 = vmatpush1.bf16.msra.mxu0 %v942
        %1069 = vmatprep.subr.bf16.mxu0 0
        %1070 = vmatpush1.bf16.msra.mxu0 %v943
        %1071 = vmatprep.subr.bf16.mxu0 0
        %1072 = vmatpush1.bf16.msra.mxu0 %v944
        %1073 = vmatprep.subr.bf16.mxu0 0
        %1074 = vmatpush1.bf16.msra.mxu0 %v945
        %1075 = vmatprep.mubr.bf16.mxu0 %v702
        %1076 = vmatmul.mubr.bf16.gmra.mrb[0].mxu0 %v701
        %v1077 = vpop.f32.mrb[0].mxu0
        %v1078 = vadd.f32 %v1013, %v1077
        %v1079 = vpop.f32.mrb[0].mxu0
        %v1080 = vpop.f32.mrb[0].mxu0
        %v1081 = vadd.f32 %v1016, %v1080
        %v1082 = vpop.f32.mrb[0].mxu0
        %1083 = vmatprep.mubr.bf16.mxu0 %v706
        %1084 = vmatmul.mubr.bf16.gmra.mrb[0].mxu0 %v705
        %v1085 = vpop.f32.mrb[0].mxu0
        %v1086 = vadd.f32 %v1021, %v1085
        %v1087 = vpop.f32.mrb[0].mxu0
        %v1088 = vpop.f32.mrb[0].mxu0
        %v1089 = vadd.f32 %v1024, %v1088
        %v1090 = vpop.f32.mrb[0].mxu0
        %1091 = vmatprep.mubr.bf16.mxu0 %v710
        %1092 = vmatmul.mubr.bf16.gmra.mrb[0].mxu0 %v709
        %v1093 = vpop.f32.mrb[0].mxu0
        %v1094 = vadd.f32 %v1029, %v1093
        %v1095 = vpop.f32.mrb[0].mxu0
        %v1096 = vpop.f32.mrb[0].mxu0
        %v1097 = vadd.f32 %v1032, %v1096
        %v1098 = vpop.f32.mrb[0].mxu0
        %1099 = vmatprep.mubr.bf16.mxu0 %v714
        %1100 = vmatmul.mubr.bf16.gmra.mrb[0].mxu0 %v713
        %v1101 = vpop.f32.mrb[0].mxu0
        %v1102 = vadd.f32 %v1037, %v1101
        %v1103 = vpop.f32.mrb[0].mxu0
        %v1104 = vpop.f32.mrb[0].mxu0
        %v1105 = vadd.f32 %v1040, %v1104
        %v1106 = vpop.f32.mrb[0].mxu0
        %1107 = vdwg.mxu0
        %1108 = vst [vmem:[%s271] sm:$0xff] %v1078
        %1109 = vst [vmem:[%s271 + $0x8] sm:$0xff] %v1081
        %1110 = vst [vmem:[%s271 + $0x10] sm:$0xff] %v1086
        %1111 = vst [vmem:[%s271 + $0x18] sm:$0xff] %v1089
        %1112 = vst [vmem:[%s271 + $0x20] sm:$0xff] %v1094
        %1113 = vst [vmem:[%s271 + $0x28] sm:$0xff] %v1097
        %1114 = vst [vmem:[%s271 + $0x30] sm:$0xff] %v1102
        %1115 = vst [vmem:[%s271 + $0x38] sm:$0xff] %v1105
        %s1116 = sand.u32 %s141, 1
        %s1117 = scalar_lea.sflag [#allocation4], %s1116
        %s1118 = sand.u32 %s141, 1
        %s1119 = smul.addr %s1118, 64
        %s1120 = scalar_lea.vmem [#allocation8], %s1119
        // Predicated region
        $region53: #{tpu_custom_call.1} parent=39 // pred_check
          %p1121 = pneg %p151
        $region54: #{tpu_custom_call.1} parent=39 // pred_check_branch
          %1123 = sbr.rel (%p1121) target = $region56
        $region55: #{tpu_custom_call.1} parent=39 // pred_region
          %s1124 = smul.u32 8, %s23
          %s1126 = ssub.s32 1024, 1024
          %1127 = vsyncadd %s1117, %s1126
          %s1128 = smul.addr %s1124, 128
          %s1129 = scalar_lea.hbm %s5, %s1128
          %s1130 = sshll.u32 %s1120, 4
          %s1131 = int_to_ptr.vmem [resolvable:$true] %s1130
          %1136 = dma.vmem_to_hbm [thread:$0]  %s1131, 1024, %s1129, %s1117, 128, 128, 8
        $region56: #{tpu_custom_call.1} parent=39 // pred_fallthru
          _
      $region40: #{tpu_custom_call.1} parent=5 // pred_fallthru
        _
      %p1137 = scmp.le.s32.totalorder 2, %s18
      // Predicated region
      $region57: #{tpu_custom_call.1} parent=5 // pred_check
        %p1138 = pneg %p1137
      $region58: #{tpu_custom_call.1} parent=5 // pred_check_branch
        %1140 = sbr.rel (%p1138) target = $region60
      $region59: #{tpu_custom_call.1} parent=5 // pred_region
        %s1141 = ssub.s32 %s18, 2
        // Predicated region
        $region61: #{tpu_custom_call.1} parent=59 // pred_check
          %p1142 = pneg %p157
        $region62: #{tpu_custom_call.1} parent=59 // pred_check_branch
          %1144 = sbr.rel (%p1142) target = $region64
        $region63: #{tpu_custom_call.1} parent=59 // pred_region
          %s1145 = sand.u32 %s142, 1
          %s1146 = scalar_lea.sflag [#allocation4], %s1145
          %s1147 = sand.u32 %s142, 1
          %s1148 = smul.addr %s1147, 64
          %s1149 = scalar_lea.vmem [#allocation8], %s1148
          %1150 = dma.done %s1146, 1024
        $region64: #{tpu_custom_call.1} parent=59 // pred_fallthru
          _
      $region60: #{tpu_custom_call.1} parent=5 // pred_fallthru
        _
    $region6: #{tpu_custom_call.1} parent=1 // loop_footer
      %s22 = sadd.s32 1, %s18
    $region7: #{tpu_custom_call.1} parent=1 // loop_footer_branch
      %17 = sbr.rel target = $region3
    $region8: #{tpu_custom_call.1} parent=1 // loop_exit
      _
    %1151 = vsyncpa [#allocation3], 1
    %s1152 = scalar_lea.sflag [#allocation3], 1
    %1153 = vsyncpa %s1152, 1
    %1154 = vsyncpa [#allocation6], 1
    %1155 = vsyncpa [#allocation4], 1
    %s1156 = scalar_lea.sflag [#allocation4], 1
    %1157 = vsyncpa %s1156, 1

</llo_original>
